<compile_context>
chip_gen: v6e
topology: v6e:2x2x1
jax: 0.10.0
libtpu: 0.0.40
codegen_flags: <defaults>
</compile_context>

<pallas_src>
import functools
import math

import jax
import jax.numpy as jnp
from jax.experimental import pallas as pl
from jax.experimental.pallas import tpu as pltpu


# ----------------------------- Pallas kernel --------------------------------
def rainbow_dqn_kernel(x_ref, w1_ref, b1_ref, w2_ref, b2_ref, wh_ref, bh_ref,
                       out_ref, *, n_atoms, n_actions, n_pad):
    # x_ref : (Bt, S)
    # w1_ref: (S, 128)    b1_ref: (1, 128)
    # w2_ref: (128, 128)  b2_ref: (1, 128)
    # wh_ref: (128, (A+1)*128)  bh_ref: (1, (A+1)*128)
    #         slab 0 = value head (padded bias lanes pre-set to -1e30 => the
    #         atom-pad mask is baked in), slabs 1..A = per-action advantage
    #         heads (padded lanes exactly 0).
    # out_ref: (Bt, ceil(A/2)*128) packed softmax distributions:
    #         action 2p -> lanes [0,64) of group p, action 2p+1 -> lanes [64,128).
    half = n_pad // 2
    x = x_ref[...]

    # Feature MLP: Linear -> ReLU -> Linear -> ReLU   (MXU, f32 accumulate)
    h = jnp.dot(x, w1_ref[...], preferred_element_type=jnp.float32) + b1_ref[...]
    h = jnp.maximum(h, 0.0)
    h = jnp.dot(h, w2_ref[...], preferred_element_type=jnp.float32) + b2_ref[...]
    h = jnp.maximum(h, 0.0)

    # Fused value + advantage head: one full-width MXU matmul.
    head = jnp.dot(h, wh_ref[...], preferred_element_type=jnp.float32) + bh_ref[...]

    value = head[:, 0:n_pad]          # (Bt, 128); lanes >= n_atoms are ~ -1e30
    adv = head[:, n_pad:]             # (Bt, A*128); padded lanes exactly 0

    # mean over actions (A is tiny -> static unroll)
    adv_sum = adv[:, 0:n_pad]
    for a in range(1, n_actions):
        adv_sum = adv_sum + adv[:, a * n_pad:(a + 1) * n_pad]
    vm = value - adv_sum * (1.0 / n_actions)   # value - mean(adv); pad ~ -1e30

    # Per-action softmax over atoms on 128-lane slabs.  Padded lanes carry
    # ~-1e30 through the dueling combine, so exp underflows them to exact 0.
    probs = []
    for a in range(n_actions):
        q_a = adv[:, a * n_pad:(a + 1) * n_pad] + vm
        m_a = jnp.max(q_a, axis=-1, keepdims=True)        # per-action max (XLU)
        e_a = jnp.exp(q_a - m_a)                          # EUP; pad lanes -> 0
        s_a = jnp.sum(e_a, axis=-1, keepdims=True)
        inv = pl.reciprocal(s_a, approx=True)             # EUP
        inv = inv * (2.0 - s_a * inv)                     # one Newton step
        probs.append(e_a * inv)                           # lanes >= n_atoms stay 0

    # Pack two actions per 128-lane output group.  probs[a] is zero outside
    # lanes [0, n_atoms) (n_atoms <= 64), so the pack is roll + add — no
    # masks, no partial stores; a single lane-dense full-slab store.
    pairs = []
    for p in range((n_actions + 1) // 2):
        lo = probs[2 * p]
        if 2 * p + 1 < n_actions:
            lo = lo + pltpu.roll(probs[2 * p + 1], shift=half, axis=1)
        pairs.append(lo)
    out_ref[...] = pairs[0] if len(pairs) == 1 else jnp.concatenate(pairs, axis=-1)


# ------------------------- head packing (wrapper side) ----------------------
def _round_up(x, m):
    return ((x + m - 1) // m) * m


def _cdiv(a, b):
    return -(-a // b)


def _pack_head(wv, bv, wa, ba, n_actions, n_atoms, n_pad):
    """Pack value + advantage heads into one lane-padded (H, (A+1)*128) RHS.

    The VALUE slab's padded bias lanes are set to -1e30, which propagates
    through the dueling combine (q_pad = 0 + (-1e30 - 0)) and makes the
    padded atoms vanish under exp — no in-kernel mask needed.  Advantage
    slabs' padded lanes stay exactly 0 so they do not poison the mean.
    """
    hidden = wv.shape[0]
    head_w = (n_actions + 1) * n_pad
    wh = jnp.zeros((hidden, head_w), jnp.float32)
    bh = jnp.zeros((1, head_w), jnp.float32)
    # value slab
    wh = wh.at[:, 0:n_atoms].set(wv)
    bh = bh.at[0, 0:n_atoms].set(bv)
    bh = bh.at[0, n_atoms:n_pad].set(-1e30)
    # advantage slabs
    for a in range(n_actions):
        col = (a + 1) * n_pad
        wh = wh.at[:, col:col + n_atoms].set(wa[:, a * n_atoms:(a + 1) * n_atoms])
        bh = bh.at[0, col:col + n_atoms].set(ba[a * n_atoms:(a + 1) * n_atoms])
    return wh, bh


# ------------------------------ wrapper --------------------------------------
def rainbow_dqn_forward(x, params, *, block_b=1024):
    (w1, b1, w2, b2, wv, bv, wa, ba) = params
    n_atoms = wv.shape[1]
    n_actions = wa.shape[1] // n_atoms
    n_pad = 128
    half = n_pad // 2
    if n_atoms > half:
        raise ValueError("packed output layout assumes n_atoms <= 64 (C51 = 51)")
    hidden = w1.shape[1]
    state_dim = w1.shape[0]
    head_w = (n_actions + 1) * n_pad
    n_pairs = (n_actions + 1) // 2
    out_w = n_pairs * n_pad

    wh, bh = _pack_head(wv, bv, wa, ba, n_actions, n_atoms, n_pad)

    # --- batch tiling: rows a multiple of 8, small padding waste, and >= 2
    # grid steps when the batch is big enough (v7x megacore only shards the
    # "parallel" axis across its two TensorCores if the grid has >= 2 steps).
    B = x.shape[0]
    block_b = max(8, _round_up(block_b, 8))
    b8 = _round_up(B, 8)
    n_tiles = _cdiv(b8, block_b)
    if n_tiles < 2 and b8 >= 16:
        n_tiles = 2
    b_tile = _round_up(_cdiv(b8, n_tiles), 8)
    B_pad = n_tiles * b_tile
    if B_pad != B:
        x = jnp.pad(x, ((0, B_pad - B), (0, 0)))

    # --- VMEM budget: double-buffered x/out tiles + weights + in-kernel temps
    # with headroom; capped at 48 MiB so it stays under v7x's 64 MiB physical.
    f32 = 4
    est = f32 * (2 * (b_tile * state_dim + b_tile * out_w)
                 + 2 * (state_dim * hidden + hidden * hidden
                        + hidden * head_w + 2 * hidden + head_w)
                 + b_tile * (hidden + head_w + (n_actions + 4) * n_pad))
    vmem_limit = min(48 << 20, max(32 << 20, int(1.5 * est)))

    kernel = functools.partial(rainbow_dqn_kernel, n_atoms=n_atoms,
                               n_actions=n_actions, n_pad=n_pad)

    out = pl.pallas_call(
        kernel,
        out_shape=jax.ShapeDtypeStruct((B_pad, out_w), jnp.float32),
        grid=(n_tiles,),
        in_specs=[
            pl.BlockSpec((b_tile, state_dim), lambda i: (i, 0)),   # x (batch tiled)
            # grid-invariant operands: constant index_map -> DMA'd once
            pl.BlockSpec((state_dim, hidden), lambda i: (0, 0)),   # w1
            pl.BlockSpec((1, hidden), lambda i: (0, 0)),           # b1
            pl.BlockSpec((hidden, hidden), lambda i: (0, 0)),      # w2
            pl.BlockSpec((1, hidden), lambda i: (0, 0)),           # b2
            pl.BlockSpec((hidden, head_w), lambda i: (0, 0)),      # fused head W
            pl.BlockSpec((1, head_w), lambda i: (0, 0)),           # fused head b
        ],
        out_specs=pl.BlockSpec((b_tile, out_w), lambda i: (i, 0)),
        compiler_params=pltpu.CompilerParams(
            dimension_semantics=("parallel",),
            vmem_limit_bytes=vmem_limit),
    )(x, w1, b1, w2, b2, wh, bh)

    # packed (B_pad, n_pairs*128) -> (B, A, n_atoms)
    out = out.reshape(B_pad, n_pairs, 2, half)[:B, :, :, :n_atoms]
    return out.reshape(B, 2 * n_pairs, n_atoms)[:, :n_actions, :]


# ------------------------- parameter construction ---------------------------
def make_params(key, state_dim, action_dim, n_atoms, hidden=128, std_init=0.5):
    ks = jax.random.split(key, 12)

    # feature_layer: Linear(state_dim,128), Linear(128,128)
    lim1 = 1.0 / math.sqrt(state_dim)
    w1 = jax.random.uniform(ks[0], (state_dim, hidden), jnp.float32, -lim1, lim1)
    b1 = jax.random.uniform(ks[1], (1, hidden), jnp.float32, -lim1, lim1)
    lim2 = 1.0 / math.sqrt(hidden)
    w2 = jax.random.uniform(ks[2], (hidden, hidden), jnp.float32, -lim2, lim2)
    b2 = jax.random.uniform(ks[3], (1, hidden), jnp.float32, -lim2, lim2)

    def scale_noise(k, size):
        n = jax.random.normal(k, (size,), dtype=jnp.float32)
        return jnp.sign(n) * jnp.sqrt(jnp.abs(n))

    def noisy_effective(kmu_w, kmu_b, keps_in, keps_out, in_f, out_f):
        mu_range = 1.0 / math.sqrt(in_f)
        w_mu = jax.random.uniform(kmu_w, (in_f, out_f), jnp.float32, -mu_range, mu_range)
        b_mu = jax.random.uniform(kmu_b, (out_f,), jnp.float32, -mu_range, mu_range)
        w_sigma = jnp.full((in_f, out_f), std_init / math.sqrt(in_f), jnp.float32)
        b_sigma = jnp.full((out_f,), std_init / math.sqrt(out_f), jnp.float32)
        eps_in = scale_noise(keps_in, in_f)
        eps_out = scale_noise(keps_out, out_f)
        w_eps = eps_in[:, None] * eps_out[None, :]          # (in, out)
        # training-mode effective weights (module default is training=True)
        return w_mu + w_sigma * w_eps, b_mu + b_sigma * eps_out

    # value_stream: NoisyLinear(128, n_atoms)
    wv, bv = noisy_effective(ks[4], ks[5], ks[6], ks[7], hidden, n_atoms)
    # advantage_stream: NoisyLinear(128, action_dim * n_atoms)
    wa, ba = noisy_effective(ks[8], ks[9], ks[10], ks[11],
                             hidden, action_dim * n_atoms)
    return (w1, b1, w2, b2, wv, bv, wa, ba)


# --------------------------- pure-JAX reference ------------------------------
def reference_forward(x, params):
    (w1, b1, w2, b2, wv, bv, wa, ba) = params
    n_atoms = wv.shape[1]
    n_actions = wa.shape[1] // n_atoms
    h = jnp.maximum(x @ w1 + b1, 0.0)
    h = jnp.maximum(h @ w2 + b2, 0.0)
    value = (h @ wv + bv).reshape(-1, 1, n_atoms)
    adv = (h @ wa + ba).reshape(-1, n_actions, n_atoms)
    q = value + adv - adv.mean(axis=1, keepdims=True)
    return jax.nn.softmax(q, axis=2)


if __name__ == "__main__":
    # CartPole-like small shapes
    state_dim, action_dim, n_atoms = 4, 2, 51
    batch = 2

    key = jax.random.PRNGKey(0)
    k_params, k_x = jax.random.split(key)
    params = make_params(k_params, state_dim, action_dim, n_atoms)
    x = jax.random.normal(k_x, (batch, state_dim), dtype=jnp.float32)

    out = jax.block_until_ready(rainbow_dqn_forward(x, params))
    ref = reference_forward(x, params)

    assert out.shape == (batch, action_dim, n_atoms)
    assert jnp.allclose(out, ref, atol=1e-5, rtol=1e-5), \
        float(jnp.max(jnp.abs(out - ref)))
    # distributions must sum to 1 per action
    assert jnp.allclose(out.sum(-1), 1.0, atol=1e-5)

    print("KERNEL_OK")
</pallas_src>

<mosaic_0001>
module attributes {stable_mosaic.version = 11 : i64} {
  func.func @rainbow_dqn_kernel(%arg0: i32, %arg1: memref<8x4xf32, #tpu.memory_space<vmem>>, %arg2: memref<4x128xf32, #tpu.memory_space<vmem>>, %arg3: memref<1x128xf32, #tpu.memory_space<vmem>>, %arg4: memref<128x128xf32, #tpu.memory_space<vmem>>, %arg5: memref<1x128xf32, #tpu.memory_space<vmem>>, %arg6: memref<128x384xf32, #tpu.memory_space<vmem>>, %arg7: memref<1x384xf32, #tpu.memory_space<vmem>>, %arg8: memref<8x128xf32, #tpu.memory_space<vmem>>) attributes {dimension_semantics = [#tpu.dimension_semantics<parallel>], iteration_bounds = array<i64: 1>, scalar_prefetch = 0 : i64, scratch_operands = 0 : i64, tpu.core_type = #tpu.core_type<tc>, window_params = [{transform_indices = @transform_0, window_bounds = array<i64: 8, 4>}, {pipeline_mode = #tpu.pipeline_mode<synchronous>, transform_indices = @transform_1, window_bounds = array<i64: 4, 128>}, {pipeline_mode = #tpu.pipeline_mode<synchronous>, transform_indices = @transform_2, window_bounds = array<i64: 1, 128>}, {pipeline_mode = #tpu.pipeline_mode<synchronous>, transform_indices = @transform_3, window_bounds = array<i64: 128, 128>}, {pipeline_mode = #tpu.pipeline_mode<synchronous>, transform_indices = @transform_4, window_bounds = array<i64: 1, 128>}, {pipeline_mode = #tpu.pipeline_mode<synchronous>, transform_indices = @transform_5, window_bounds = array<i64: 128, 384>}, {pipeline_mode = #tpu.pipeline_mode<synchronous>, transform_indices = @transform_6, window_bounds = array<i64: 1, 384>}, {transform_indices = @transform_7, window_bounds = array<i64: 8, 128>}]} {
    %c0 = arith.constant 0 : index
    %c0_0 = arith.constant 0 : index
    %0 = vector.load %arg1[%c0, %c0_0] : memref<8x4xf32, #tpu.memory_space<vmem>>, vector<8x4xf32>
    %c0_1 = arith.constant 0 : index
    %c0_2 = arith.constant 0 : index
    %1 = vector.load %arg2[%c0_1, %c0_2] : memref<4x128xf32, #tpu.memory_space<vmem>>, vector<4x128xf32>
    %cst = arith.constant dense<0.000000e+00> : vector<8x128xf32>
    %2 = tpu.matmul %0, %1, %cst {dimension_numbers = #tpu.dot_dimension_numbers<[1], [0], [0], [1], [0, 0, 1, 1], [], []>} : vector<8x4xf32>, vector<4x128xf32>, vector<8x128xf32> -> vector<8x128xf32>
    %c0_3 = arith.constant 0 : index
    %c0_4 = arith.constant 0 : index
    %3 = vector.load %arg3[%c0_3, %c0_4] : memref<1x128xf32, #tpu.memory_space<vmem>>, vector<1x128xf32>
    %4 = vector.broadcast %3 : vector<1x128xf32> to vector<8x128xf32>
    %5 = arith.addf %2, %4 : vector<8x128xf32>
    %cst_5 = arith.constant 0.000000e+00 : f32
    %6 = vector.broadcast %cst_5 : f32 to vector<8x128xf32>
    %7 = arith.maximumf %5, %6 : vector<8x128xf32>
    %c0_6 = arith.constant 0 : index
    %c0_7 = arith.constant 0 : index
    %8 = vector.load %arg4[%c0_6, %c0_7] : memref<128x128xf32, #tpu.memory_space<vmem>>, vector<128x128xf32>
    %cst_8 = arith.constant dense<0.000000e+00> : vector<8x128xf32>
    %9 = tpu.matmul %7, %8, %cst_8 {dimension_numbers = #tpu.dot_dimension_numbers<[1], [0], [0], [1], [0, 0, 1, 1], [], []>} : vector<8x128xf32>, vector<128x128xf32>, vector<8x128xf32> -> vector<8x128xf32>
    %c0_9 = arith.constant 0 : index
    %c0_10 = arith.constant 0 : index
    %10 = vector.load %arg5[%c0_9, %c0_10] : memref<1x128xf32, #tpu.memory_space<vmem>>, vector<1x128xf32>
    %11 = vector.broadcast %10 : vector<1x128xf32> to vector<8x128xf32>
    %12 = arith.addf %9, %11 : vector<8x128xf32>
    %cst_11 = arith.constant 0.000000e+00 : f32
    %13 = vector.broadcast %cst_11 : f32 to vector<8x128xf32>
    %14 = arith.maximumf %12, %13 : vector<8x128xf32>
    %c0_12 = arith.constant 0 : index
    %c0_13 = arith.constant 0 : index
    %15 = vector.load %arg6[%c0_12, %c0_13] : memref<128x384xf32, #tpu.memory_space<vmem>>, vector<128x384xf32>
    %cst_14 = arith.constant dense<0.000000e+00> : vector<8x384xf32>
    %16 = tpu.matmul %14, %15, %cst_14 {dimension_numbers = #tpu.dot_dimension_numbers<[1], [0], [0], [1], [0, 0, 1, 1], [], []>} : vector<8x128xf32>, vector<128x384xf32>, vector<8x384xf32> -> vector<8x384xf32>
    %c0_15 = arith.constant 0 : index
    %c0_16 = arith.constant 0 : index
    %17 = vector.load %arg7[%c0_15, %c0_16] : memref<1x384xf32, #tpu.memory_space<vmem>>, vector<1x384xf32>
    %18 = vector.broadcast %17 : vector<1x384xf32> to vector<8x384xf32>
    %19 = arith.addf %16, %18 : vector<8x384xf32>
    %20 = vector.extract_strided_slice %19 {offsets = [0, 0], sizes = [8, 128], strides = [1, 1]} : vector<8x384xf32> to vector<8x128xf32>
    %21 = vector.extract_strided_slice %19 {offsets = [0, 128], sizes = [8, 256], strides = [1, 1]} : vector<8x384xf32> to vector<8x256xf32>
    %22 = vector.extract_strided_slice %21 {offsets = [0, 0], sizes = [8, 128], strides = [1, 1]} : vector<8x256xf32> to vector<8x128xf32>
    %23 = vector.extract_strided_slice %21 {offsets = [0, 128], sizes = [8, 128], strides = [1, 1]} : vector<8x256xf32> to vector<8x128xf32>
    %24 = arith.addf %22, %23 : vector<8x128xf32>
    %cst_17 = arith.constant 5.000000e-01 : f32
    %25 = vector.broadcast %cst_17 : f32 to vector<8x128xf32>
    %26 = arith.mulf %24, %25 : vector<8x128xf32>
    %27 = arith.subf %20, %26 : vector<8x128xf32>
    %28 = vector.extract_strided_slice %21 {offsets = [0, 0], sizes = [8, 128], strides = [1, 1]} : vector<8x256xf32> to vector<8x128xf32>
    %29 = arith.addf %28, %27 : vector<8x128xf32>
    %cst_18 = arith.constant dense<0xFF800000> : vector<8xf32>
    %30 = vector.multi_reduction <maximumf>, %29, %cst_18 [1] : vector<8x128xf32> to vector<8xf32>
    %31 = vector.shape_cast %30 : vector<8xf32> to vector<8x1xf32>
    %32 = vector.broadcast %31 : vector<8x1xf32> to vector<8x128xf32>
    %33 = arith.subf %29, %32 : vector<8x128xf32>
    %34 = math.exp %33 : vector<8x128xf32>
    %cst_19 = arith.constant dense<0.000000e+00> : vector<8xf32>
    %35 = vector.multi_reduction <add>, %34, %cst_19 [1] : vector<8x128xf32> to vector<8xf32>
    %36 = vector.shape_cast %35 : vector<8xf32> to vector<8x1xf32>
    %37 = tpu.reciprocal %36 {approx = true} : vector<8x1xf32> -> vector<8x1xf32>
    %38 = arith.mulf %36, %37 : vector<8x1xf32>
    %cst_20 = arith.constant 2.000000e+00 : f32
    %39 = vector.broadcast %cst_20 : f32 to vector<8x1xf32>
    %40 = arith.subf %39, %38 : vector<8x1xf32>
    %41 = arith.mulf %37, %40 : vector<8x1xf32>
    %42 = vector.broadcast %41 : vector<8x1xf32> to vector<8x128xf32>
    %43 = arith.mulf %34, %42 : vector<8x128xf32>
    %44 = vector.extract_strided_slice %21 {offsets = [0, 128], sizes = [8, 128], strides = [1, 1]} : vector<8x256xf32> to vector<8x128xf32>
    %45 = arith.addf %44, %27 : vector<8x128xf32>
    %cst_21 = arith.constant dense<0xFF800000> : vector<8xf32>
    %46 = vector.multi_reduction <maximumf>, %45, %cst_21 [1] : vector<8x128xf32> to vector<8xf32>
    %47 = vector.shape_cast %46 : vector<8xf32> to vector<8x1xf32>
    %48 = vector.broadcast %47 : vector<8x1xf32> to vector<8x128xf32>
    %49 = arith.subf %45, %48 : vector<8x128xf32>
    %50 = math.exp %49 : vector<8x128xf32>
    %cst_22 = arith.constant dense<0.000000e+00> : vector<8xf32>
    %51 = vector.multi_reduction <add>, %50, %cst_22 [1] : vector<8x128xf32> to vector<8xf32>
    %52 = vector.shape_cast %51 : vector<8xf32> to vector<8x1xf32>
    %53 = tpu.reciprocal %52 {approx = true} : vector<8x1xf32> -> vector<8x1xf32>
    %54 = arith.mulf %52, %53 : vector<8x1xf32>
    %cst_23 = arith.constant 2.000000e+00 : f32
    %55 = vector.broadcast %cst_23 : f32 to vector<8x1xf32>
    %56 = arith.subf %55, %54 : vector<8x1xf32>
    %57 = arith.mulf %53, %56 : vector<8x1xf32>
    %58 = vector.broadcast %57 : vector<8x1xf32> to vector<8x128xf32>
    %59 = arith.mulf %50, %58 : vector<8x128xf32>
    %c64_i32 = arith.constant 64 : i32
    %60 = tpu.dynamic_rotate %59 by %c64_i32 dim 1 : vector<8x128xf32>, i32 -> vector<8x128xf32>
    %61 = arith.addf %43, %60 : vector<8x128xf32>
    %c0_24 = arith.constant 0 : index
    %c0_25 = arith.constant 0 : index
    %62 = vector.load %arg8[%c0_24, %c0_25] : memref<8x128xf32, #tpu.memory_space<vmem>>, vector<8x128xf32>
    tpu.vector_store %arg8[%c0_24, %c0_25], %61 {strides = array<i32>} : memref<8x128xf32, #tpu.memory_space<vmem>>, vector<8x128xf32>,
    return
  }
  func.func @transform_0(%arg0: i32) -> (i32, i32) {
    %c0_i32 = arith.constant 0 : i32
    %c0_i32_0 = arith.constant 0 : i32
    return %arg0, %c0_i32 : i32, i32
  }
  func.func @transform_1(%arg0: i32) -> (i32, i32) {
    %c0_i32 = arith.constant 0 : i32
    %c0_i32_0 = arith.constant 0 : i32
    %c0_i32_1 = arith.constant 0 : i32
    return %c0_i32, %c0_i32_0 : i32, i32
  }
  func.func @transform_2(%arg0: i32) -> (i32, i32) {
    %c0_i32 = arith.constant 0 : i32
    %c0_i32_0 = arith.constant 0 : i32
    %c0_i32_1 = arith.constant 0 : i32
    return %c0_i32, %c0_i32_0 : i32, i32
  }
  func.func @transform_3(%arg0: i32) -> (i32, i32) {
    %c0_i32 = arith.constant 0 : i32
    %c0_i32_0 = arith.constant 0 : i32
    %c0_i32_1 = arith.constant 0 : i32
    return %c0_i32, %c0_i32_0 : i32, i32
  }
  func.func @transform_4(%arg0: i32) -> (i32, i32) {
    %c0_i32 = arith.constant 0 : i32
    %c0_i32_0 = arith.constant 0 : i32
    %c0_i32_1 = arith.constant 0 : i32
    return %c0_i32, %c0_i32_0 : i32, i32
  }
  func.func @transform_5(%arg0: i32) -> (i32, i32) {
    %c0_i32 = arith.constant 0 : i32
    %c0_i32_0 = arith.constant 0 : i32
    %c0_i32_1 = arith.constant 0 : i32
    return %c0_i32, %c0_i32_0 : i32, i32
  }
  func.func @transform_6(%arg0: i32) -> (i32, i32) {
    %c0_i32 = arith.constant 0 : i32
    %c0_i32_0 = arith.constant 0 : i32
    %c0_i32_1 = arith.constant 0 : i32
    return %c0_i32, %c0_i32_0 : i32, i32
  }
  func.func @transform_7(%arg0: i32) -> (i32, i32) {
    %c0_i32 = arith.constant 0 : i32
    %c0_i32_0 = arith.constant 0 : i32
    return %arg0, %c0_i32 : i32, i32
  }
}

</mosaic_0001>

<llo_original>
// kernel: tpu_custom_call.1
$region0: #{tpu_custom_call.1}
  #allocation0 [shape = 'u32[]', space=smem, size = 0x4, offset = 0x4, fixed_abs, tag = 'smem constant byte address 0x4 - core index']
  #allocation1 [shape = 'u32[144,128]{1,0:T(1,128)}', space=vmem, size = 0x12000, scoped, tag = 'internal scratch']
  %s0 = inlined_call_operand.vmem [shape: f32[8,4], index: 0, kind: input, shape index: {}]
  %s1 = inlined_call_operand.vmem [shape: f32[4,128], index: 1, kind: input, shape index: {}]
  %s2 = inlined_call_operand.vmem [shape: f32[1,128], index: 2, kind: input, shape index: {}]
  %s3 = inlined_call_operand.hbm [shape: f32[128,128], index: 3, kind: input, shape index: {}]
  %s4 = inlined_call_operand.vmem [shape: f32[1,128], index: 4, kind: input, shape index: {}]
  %s5 = inlined_call_operand.hbm [shape: f32[128,384], index: 5, kind: input, shape index: {}]
  %s6 = inlined_call_operand.vmem [shape: f32[1,384], index: 6, kind: input, shape index: {}]
  %s7 = inlined_call_operand.hbm [shape: f32[8,128], index: 7, kind: output, shape index: {}]
  %s8 = sld [smem:[#allocation0]]
  $region46: #{tpu_custom_call.1} parent=0
    _
  %s10 = ssub.s32 1, %s8
  %s11 = scalar_select 0, %s10, %s8
  $region1: #{tpu_custom_call.1} parent=0
    #allocation2 [shape = 'u8[65536]{0}', space=vmem, size = 0x10000, scoped, tag = 'input window, operand 3, single buffered']
    #allocation3 [shape = 's32[1]{0}', space=sflag, size = 0x4, scoped, tag = 'scoped memory for tpu_custom_call.1']
    #allocation4 [shape = 's32[1]{0}', space=sflag, size = 0x4, scoped, tag = 'scoped memory for tpu_custom_call.1']
    #allocation5 [shape = 'u8[196608]{0}', space=vmem, size = 0x30000, scoped, tag = 'input window, operand 5, single buffered']
    #allocation6 [shape = 's32[1]{0}', space=sflag, size = 0x4, scoped, tag = 'scoped memory for tpu_custom_call.1']
    #allocation7 [shape = 'u8[4096]{0}', space=vmem, size = 0x1000, scoped, tag = 'output window, operand 0, single buffered']
    %12 = vsyncpa [#allocation3], 0
    %13 = vsyncpa [#allocation6], 0
    %14 = vsyncpa [#allocation4], 0
    // Predicated region
    $region2: #{tpu_custom_call.1} parent=1 // pred_check
      _
    $region3: #{tpu_custom_call.1} parent=1 // pred_check_branch
      %16 = sbr.rel (0) target = $region5
    $region4: #{tpu_custom_call.1} parent=1 // pred_region
      _
    $region5: #{tpu_custom_call.1} parent=1 // pred_fallthru
      _
    // Predicated region
    $region6: #{tpu_custom_call.1} parent=1 // pred_check
      _
    $region7: #{tpu_custom_call.1} parent=1 // pred_check_branch
      %18 = sbr.rel (0) target = $region9
    $region8: #{tpu_custom_call.1} parent=1 // pred_region
      _
    $region9: #{tpu_custom_call.1} parent=1 // pred_fallthru
      _
    // Predicated region
    $region10: #{tpu_custom_call.1} parent=1 // pred_check
      _
    $region11: #{tpu_custom_call.1} parent=1 // pred_check_branch
      %20 = sbr.rel (0) target = $region13
    $region12: #{tpu_custom_call.1} parent=1 // pred_region
      _
    $region13: #{tpu_custom_call.1} parent=1 // pred_fallthru
      _
    // Predicated region
    $region14: #{tpu_custom_call.1} parent=1 // pred_check
      _
    $region15: #{tpu_custom_call.1} parent=1 // pred_check_branch
      %22 = sbr.rel (0) target = $region17
    $region16: #{tpu_custom_call.1} parent=1 // pred_region
      %s24 = ssub.s32 2048, 2048
      %25 = vsyncadd [#allocation3], %s24
      %s26 = sshll.u32 [#allocation2], 4
      %s27 = int_to_ptr.vmem [resolvable:$true] %s26
      %32 = dma.hbm_to_vmem [thread:$0]  %s3, 2048, %s27, [#allocation3], 128, 128, 8
    $region17: #{tpu_custom_call.1} parent=1 // pred_fallthru
      _
    // Predicated region
    $region18: #{tpu_custom_call.1} parent=1 // pred_check
      _
    $region19: #{tpu_custom_call.1} parent=1 // pred_check_branch
      %34 = sbr.rel (0) target = $region21
    $region20: #{tpu_custom_call.1} parent=1 // pred_region
      _
    $region21: #{tpu_custom_call.1} parent=1 // pred_fallthru
      _
    // Predicated region
    $region22: #{tpu_custom_call.1} parent=1 // pred_check
      _
    $region23: #{tpu_custom_call.1} parent=1 // pred_check_branch
      %36 = sbr.rel (0) target = $region25
    $region24: #{tpu_custom_call.1} parent=1 // pred_region
      %s38 = ssub.s32 6144, 6144
      %39 = vsyncadd [#allocation6], %s38
      %s40 = sshll.u32 [#allocation5], 4
      %s41 = int_to_ptr.vmem [resolvable:$true] %s40
      %46 = dma.hbm_to_vmem [thread:$0]  %s5, 6144, %s41, [#allocation6], 384, 384, 24
    $region25: #{tpu_custom_call.1} parent=1 // pred_fallthru
      _
    // Predicated region
    $region26: #{tpu_custom_call.1} parent=1 // pred_check
      _
    $region27: #{tpu_custom_call.1} parent=1 // pred_check_branch
      %48 = sbr.rel (0) target = $region29
    $region28: #{tpu_custom_call.1} parent=1 // pred_region
      _
    $region29: #{tpu_custom_call.1} parent=1 // pred_fallthru
      _
    // Predicated region
    $region30: #{tpu_custom_call.1} parent=1 // pred_check
      _
    $region31: #{tpu_custom_call.1} parent=1 // pred_check_branch
      %50 = sbr.rel (0) target = $region33
    $region32: #{tpu_custom_call.1} parent=1 // pred_region
      %51 = dma.done [#allocation3], 2048
    $region33: #{tpu_custom_call.1} parent=1 // pred_fallthru
      _
    // Predicated region
    $region34: #{tpu_custom_call.1} parent=1 // pred_check
      _
    $region35: #{tpu_custom_call.1} parent=1 // pred_check_branch
      %53 = sbr.rel (0) target = $region37
    $region36: #{tpu_custom_call.1} parent=1 // pred_region
      %54 = dma.done [#allocation6], 6144
    $region37: #{tpu_custom_call.1} parent=1 // pred_fallthru
      _
    %v55 = vld [vmem:[%s0] sm:$0xff]
    %v56 = vld [vmem:[%s1] sm:$0xf]
    %v57 = vld [vmem:[%s2] sm:$0x1]
    %v59 = vlaneseq
    %v60 = vshrl.u32 %v59, 7
    %v61 = vsub.s32 0, %v60
    %v62 = vrot.slane %v57, %v61
    %vm64 = vcmask 31744
    %v66 = vsel %vm64, %v55, 0
    %vm68 = vcmask 1043456
    %v70 = vsel %vm68, %v56, 0
    %72 = vmatprep.subr.mxu0 0.0
    %73 = vmatpush1.msra.mxu0 0.0
    %74 = vmatprep.subr.mxu0 0.0
    %75 = vmatpush1.msra.mxu0 0.0
    %76 = vmatprep.subr.mxu0 0.0
    %77 = vmatpush1.msra.mxu0 0.0
    %78 = vmatprep.subr.mxu0 0.0
    %79 = vmatpush1.msra.mxu0 0.0
    %80 = vmatprep.subr.mxu0 0.0
    %81 = vmatpush1.msra.mxu0 0.0
    %82 = vmatprep.subr.mxu0 0.0
    %83 = vmatpush1.msra.mxu0 0.0
    %84 = vmatprep.subr.mxu0 0.0
    %85 = vmatpush1.msra.mxu0 0.0
    %86 = vmatprep.subr.mxu0 0.0
    %87 = vmatpush1.msra.mxu0 0.0
    %88 = vmatprep.subr.mxu0 0.0
    %89 = vmatpush1.msra.mxu0 0.0
    %90 = vmatprep.subr.mxu0 0.0
    %91 = vmatpush1.msra.mxu0 0.0
    %92 = vmatprep.subr.mxu0 0.0
    %93 = vmatpush1.msra.mxu0 0.0
    %94 = vmatprep.subr.mxu0 0.0
    %95 = vmatpush1.msra.mxu0 0.0
    %96 = vmatprep.subr.mxu0 0.0
    %97 = vmatpush1.msra.mxu0 0.0
    %98 = vmatprep.subr.mxu0 0.0
    %99 = vmatpush1.msra.mxu0 0.0
    %100 = vmatprep.subr.mxu0 0.0
    %101 = vmatpush1.msra.mxu0 0.0
    %102 = vmatprep.subr.mxu0 0.0
    %103 = vmatpush1.msra.mxu0 %v70
    %104 = vmatprep.subr.mxu0 0.0
    %105 = vmatpush2.msra.mxu0 0.0
    %106 = vmatprep.subr.mxu0 0.0
    %107 = vmatpush2.msra.mxu0 0.0
    %108 = vmatprep.subr.mxu0 0.0
    %109 = vmatpush2.msra.mxu0 0.0
    %110 = vmatprep.subr.mxu0 0.0
    %111 = vmatpush2.msra.mxu0 0.0
    %112 = vmatprep.subr.mxu0 0.0
    %113 = vmatpush2.msra.mxu0 0.0
    %114 = vmatprep.subr.mxu0 0.0
    %115 = vmatpush2.msra.mxu0 0.0
    %116 = vmatprep.subr.mxu0 0.0
    %117 = vmatpush2.msra.mxu0 0.0
    %118 = vmatprep.subr.mxu0 0.0
    %119 = vmatpush2.msra.mxu0 0.0
    %120 = vmatprep.subr.mxu0 0.0
    %121 = vmatpush2.msra.mxu0 0.0
    %122 = vmatprep.subr.mxu0 0.0
    %123 = vmatpush2.msra.mxu0 0.0
    %124 = vmatprep.subr.mxu0 0.0
    %125 = vmatpush2.msra.mxu0 0.0
    %126 = vmatprep.subr.mxu0 0.0
    %127 = vmatpush2.msra.mxu0 0.0
    %128 = vmatprep.subr.mxu0 0.0
    %129 = vmatpush2.msra.mxu0 0.0
    %130 = vmatprep.subr.mxu0 0.0
    %131 = vmatpush2.msra.mxu0 0.0
    %132 = vmatprep.subr.mxu0 0.0
    %133 = vmatpush2.msra.mxu0 0.0
    %134 = vmatprep.subr.mxu0 0.0
    %135 = vmatpush2.msra.mxu0 0.0
    %136 = vmatprep.mubr.f32.mxu0 0.0
    %137 = vmatmul.mubr.f32.gmra.mxu0 %v66
    %v138 = vpop.f32.mrf.mxu0
    %v139 = vadd.f32 %v62, %v138
    %v140 = vpop.f32.mrf.mxu0
    %141 = vdwg.mxu0
    %v142 = vmax.f32 %v139, 0.0
    %v143 = vld [vmem:[#allocation2] sm:$0xff]
    %v144 = vld [vmem:[#allocation2 + $0x8] sm:$0xff]
    %v145 = vld [vmem:[#allocation2 + $0x10] sm:$0xff]
    %v146 = vld [vmem:[#allocation2 + $0x18] sm:$0xff]
    %v147 = vld [vmem:[#allocation2 + $0x20] sm:$0xff]
    %v148 = vld [vmem:[#allocation2 + $0x28] sm:$0xff]
    %v149 = vld [vmem:[#allocation2 + $0x30] sm:$0xff]
    %v150 = vld [vmem:[#allocation2 + $0x38] sm:$0xff]
    %v151 = vld [vmem:[#allocation2 + $0x40] sm:$0xff]
    %v152 = vld [vmem:[#allocation2 + $0x48] sm:$0xff]
    %v153 = vld [vmem:[#allocation2 + $0x50] sm:$0xff]
    %v154 = vld [vmem:[#allocation2 + $0x58] sm:$0xff]
    %v155 = vld [vmem:[#allocation2 + $0x60] sm:$0xff]
    %v156 = vld [vmem:[#allocation2 + $0x68] sm:$0xff]
    %v157 = vld [vmem:[#allocation2 + $0x70] sm:$0xff]
    %v158 = vld [vmem:[#allocation2 + $0x78] sm:$0xff]
    %v159 = vld [vmem:[%s4] sm:$0x1]
    %v161 = vlaneseq
    %v162 = vshrl.u32 %v161, 7
    %v163 = vsub.s32 0, %v162
    %v164 = vrot.slane %v159, %v163
    %166 = vmatprep.subr.mxu0 0.0
    %167 = vmatpush1.msra.mxu0 %v158
    %168 = vmatprep.subr.mxu0 0.0
    %169 = vmatpush1.msra.mxu0 %v157
    %170 = vmatprep.subr.mxu0 0.0
    %171 = vmatpush1.msra.mxu0 %v156
    %172 = vmatprep.subr.mxu0 0.0
    %173 = vmatpush1.msra.mxu0 %v155
    %174 = vmatprep.subr.mxu0 0.0
    %175 = vmatpush1.msra.mxu0 %v154
    %176 = vmatprep.subr.mxu0 0.0
    %177 = vmatpush1.msra.mxu0 %v153
    %178 = vmatprep.subr.mxu0 0.0
    %179 = vmatpush1.msra.mxu0 %v152
    %180 = vmatprep.subr.mxu0 0.0
    %181 = vmatpush1.msra.mxu0 %v151
    %182 = vmatprep.subr.mxu0 0.0
    %183 = vmatpush1.msra.mxu0 %v150
    %184 = vmatprep.subr.mxu0 0.0
    %185 = vmatpush1.msra.mxu0 %v149
    %186 = vmatprep.subr.mxu0 0.0
    %187 = vmatpush1.msra.mxu0 %v148
    %188 = vmatprep.subr.mxu0 0.0
    %189 = vmatpush1.msra.mxu0 %v147
    %190 = vmatprep.subr.mxu0 0.0
    %191 = vmatpush1.msra.mxu0 %v146
    %192 = vmatprep.subr.mxu0 0.0
    %193 = vmatpush1.msra.mxu0 %v145
    %194 = vmatprep.subr.mxu0 0.0
    %195 = vmatpush1.msra.mxu0 %v144
    %196 = vmatprep.subr.mxu0 0.0
    %197 = vmatpush1.msra.mxu0 %v143
    %198 = vmatprep.subr.mxu0 0.0
    %199 = vmatpush2.msra.mxu0 0.0
    %200 = vmatprep.subr.mxu0 0.0
    %201 = vmatpush2.msra.mxu0 0.0
    %202 = vmatprep.subr.mxu0 0.0
    %203 = vmatpush2.msra.mxu0 0.0
    %204 = vmatprep.subr.mxu0 0.0
    %205 = vmatpush2.msra.mxu0 0.0
    %206 = vmatprep.subr.mxu0 0.0
    %207 = vmatpush2.msra.mxu0 0.0
    %208 = vmatprep.subr.mxu0 0.0
    %209 = vmatpush2.msra.mxu0 0.0
    %210 = vmatprep.subr.mxu0 0.0
    %211 = vmatpush2.msra.mxu0 0.0
    %212 = vmatprep.subr.mxu0 0.0
    %213 = vmatpush2.msra.mxu0 0.0
    %214 = vmatprep.subr.mxu0 0.0
    %215 = vmatpush2.msra.mxu0 0.0
    %216 = vmatprep.subr.mxu0 0.0
    %217 = vmatpush2.msra.mxu0 0.0
    %218 = vmatprep.subr.mxu0 0.0
    %219 = vmatpush2.msra.mxu0 0.0
    %220 = vmatprep.subr.mxu0 0.0
    %221 = vmatpush2.msra.mxu0 0.0
    %222 = vmatprep.subr.mxu0 0.0
    %223 = vmatpush2.msra.mxu0 0.0
    %224 = vmatprep.subr.mxu0 0.0
    %225 = vmatpush2.msra.mxu0 0.0
    %226 = vmatprep.subr.mxu0 0.0
    %227 = vmatpush2.msra.mxu0 0.0
    %228 = vmatprep.subr.mxu0 0.0
    %229 = vmatpush2.msra.mxu0 0.0
    %230 = vmatprep.mubr.f32.mxu0 0.0
    %231 = vmatmul.mubr.f32.gmra.mxu0 %v142
    %v232 = vpop.f32.mrf.mxu0
    %v233 = vadd.f32 %v164, %v232
    %v234 = vpop.f32.mrf.mxu0
    %235 = vdwg.mxu0
    %v236 = vmax.f32 %v233, 0.0
    %v237 = vld [vmem:[#allocation5] sm:$0xff]
    %v238 = vld [vmem:[#allocation5 + $0x8] sm:$0xff]
    %v239 = vld [vmem:[#allocation5 + $0x10] sm:$0xff]
    %v240 = vld [vmem:[#allocation5 + $0x18] sm:$0xff]
    %v241 = vld [vmem:[#allocation5 + $0x20] sm:$0xff]
    %v242 = vld [vmem:[#allocation5 + $0x28] sm:$0xff]
    %v243 = vld [vmem:[#allocation5 + $0x30] sm:$0xff]
    %v244 = vld [vmem:[#allocation5 + $0x38] sm:$0xff]
    %v245 = vld [vmem:[#allocation5 + $0x40] sm:$0xff]
    %v246 = vld [vmem:[#allocation5 + $0x48] sm:$0xff]
    %v247 = vld [vmem:[#allocation5 + $0x50] sm:$0xff]
    %v248 = vld [vmem:[#allocation5 + $0x58] sm:$0xff]
    %v249 = vld [vmem:[#allocation5 + $0x60] sm:$0xff]
    %v250 = vld [vmem:[#allocation5 + $0x68] sm:$0xff]
    %v251 = vld [vmem:[#allocation5 + $0x70] sm:$0xff]
    %v252 = vld [vmem:[#allocation5 + $0x78] sm:$0xff]
    %v253 = vld [vmem:[#allocation5 + $0x80] sm:$0xff]
    %v254 = vld [vmem:[#allocation5 + $0x88] sm:$0xff]
    %v255 = vld [vmem:[#allocation5 + $0x90] sm:$0xff]
    %v256 = vld [vmem:[#allocation5 + $0x98] sm:$0xff]
    %v257 = vld [vmem:[#allocation5 + $0xa0] sm:$0xff]
    %v258 = vld [vmem:[#allocation5 + $0xa8] sm:$0xff]
    %v259 = vld [vmem:[#allocation5 + $0xb0] sm:$0xff]
    %v260 = vld [vmem:[#allocation5 + $0xb8] sm:$0xff]
    %v261 = vld [vmem:[#allocation5 + $0xc0] sm:$0xff]
    %v262 = vld [vmem:[#allocation5 + $0xc8] sm:$0xff]
    %v263 = vld [vmem:[#allocation5 + $0xd0] sm:$0xff]
    %v264 = vld [vmem:[#allocation5 + $0xd8] sm:$0xff]
    %v265 = vld [vmem:[#allocation5 + $0xe0] sm:$0xff]
    %v266 = vld [vmem:[#allocation5 + $0xe8] sm:$0xff]
    %v267 = vld [vmem:[#allocation5 + $0xf0] sm:$0xff]
    %v268 = vld [vmem:[#allocation5 + $0xf8] sm:$0xff]
    %v269 = vld [vmem:[#allocation5 + $0x100] sm:$0xff]
    %v270 = vld [vmem:[#allocation5 + $0x108] sm:$0xff]
    %v271 = vld [vmem:[#allocation5 + $0x110] sm:$0xff]
    %v272 = vld [vmem:[#allocation5 + $0x118] sm:$0xff]
    %v273 = vld [vmem:[#allocation5 + $0x120] sm:$0xff]
    %v274 = vld [vmem:[#allocation5 + $0x128] sm:$0xff]
    %v275 = vld [vmem:[#allocation5 + $0x130] sm:$0xff]
    %v276 = vld [vmem:[#allocation5 + $0x138] sm:$0xff]
    %v277 = vld [vmem:[#allocation5 + $0x140] sm:$0xff]
    %v278 = vld [vmem:[#allocation5 + $0x148] sm:$0xff]
    %v279 = vld [vmem:[#allocation5 + $0x150] sm:$0xff]
    %v280 = vld [vmem:[#allocation5 + $0x158] sm:$0xff]
    %v281 = vld [vmem:[#allocation5 + $0x160] sm:$0xff]
    %v282 = vld [vmem:[#allocation5 + $0x168] sm:$0xff]
    %v283 = vld [vmem:[#allocation5 + $0x170] sm:$0xff]
    %v284 = vld [vmem:[#allocation5 + $0x178] sm:$0xff]
    %v285 = vld [vmem:[%s6] sm:$0x7]
    %v287 = vlaneseq
    %v288 = vshrl.u32 %v287, 7
    %v289 = vsub.s32 0, %v288
    %v290 = vrot.slane %v285, %v289
    %v291 = vlaneseq
    %v292 = vshrl.u32 %v291, 7
    %v293 = vsub.s32 1, %v292
    %v294 = vrot.slane %v285, %v293
    %v295 = vlaneseq
    %v296 = vshrl.u32 %v295, 7
    %v297 = vsub.s32 2, %v296
    %v298 = vrot.slane %v285, %v297
    %302 = vmatprep.subr.mxu0 %v283
    %303 = vmatpush1.msra.mxu0 %v282
    %304 = vmatprep.subr.mxu0 %v280
    %305 = vmatpush1.msra.mxu0 %v279
    %306 = vmatprep.subr.mxu0 %v277
    %307 = vmatpush1.msra.mxu0 %v276
    %308 = vmatprep.subr.mxu0 %v274
    %309 = vmatpush1.msra.mxu0 %v273
    %310 = vmatprep.subr.mxu0 %v271
    %311 = vmatpush1.msra.mxu0 %v270
    %312 = vmatprep.subr.mxu0 %v268
    %313 = vmatpush1.msra.mxu0 %v267
    %314 = vmatprep.subr.mxu0 %v265
    %315 = vmatpush1.msra.mxu0 %v264
    %316 = vmatprep.subr.mxu0 %v262
    %317 = vmatpush1.msra.mxu0 %v261
    %318 = vmatprep.subr.mxu0 %v259
    %319 = vmatpush1.msra.mxu0 %v258
    %320 = vmatprep.subr.mxu0 %v256
    %321 = vmatpush1.msra.mxu0 %v255
    %322 = vmatprep.subr.mxu0 %v253
    %323 = vmatpush1.msra.mxu0 %v252
    %324 = vmatprep.subr.mxu0 %v250
    %325 = vmatpush1.msra.mxu0 %v249
    %326 = vmatprep.subr.mxu0 %v247
    %327 = vmatpush1.msra.mxu0 %v246
    %328 = vmatprep.subr.mxu0 %v244
    %329 = vmatpush1.msra.mxu0 %v243
    %330 = vmatprep.subr.mxu0 %v241
    %331 = vmatpush1.msra.mxu0 %v240
    %332 = vmatprep.subr.mxu0 %v238
    %333 = vmatpush1.msra.mxu0 %v237
    %334 = vmatprep.subr.mxu0 0.0
    %335 = vmatpush2.msra.mxu0 0.0
    %336 = vmatprep.subr.mxu0 0.0
    %337 = vmatpush2.msra.mxu0 0.0
    %338 = vmatprep.subr.mxu0 0.0
    %339 = vmatpush2.msra.mxu0 0.0
    %340 = vmatprep.subr.mxu0 0.0
    %341 = vmatpush2.msra.mxu0 0.0
    %342 = vmatprep.subr.mxu0 0.0
    %343 = vmatpush2.msra.mxu0 0.0
    %344 = vmatprep.subr.mxu0 0.0
    %345 = vmatpush2.msra.mxu0 0.0
    %346 = vmatprep.subr.mxu0 0.0
    %347 = vmatpush2.msra.mxu0 0.0
    %348 = vmatprep.subr.mxu0 0.0
    %349 = vmatpush2.msra.mxu0 0.0
    %350 = vmatprep.subr.mxu0 0.0
    %351 = vmatpush2.msra.mxu0 0.0
    %352 = vmatprep.subr.mxu0 0.0
    %353 = vmatpush2.msra.mxu0 0.0
    %354 = vmatprep.subr.mxu0 0.0
    %355 = vmatpush2.msra.mxu0 0.0
    %356 = vmatprep.subr.mxu0 0.0
    %357 = vmatpush2.msra.mxu0 0.0
    %358 = vmatprep.subr.mxu0 0.0
    %359 = vmatpush2.msra.mxu0 0.0
    %360 = vmatprep.subr.mxu0 0.0
    %361 = vmatpush2.msra.mxu0 0.0
    %362 = vmatprep.subr.mxu0 0.0
    %363 = vmatpush2.msra.mxu0 0.0
    %364 = vmatprep.subr.mxu0 0.0
    %365 = vmatpush2.msra.mxu0 0.0
    %366 = vmatprep.mubr.f32.mxu0 0.0
    %367 = vmatmul.mubr.f32.gmra.mxu0 %v236
    %v368 = vpop.f32.mrf.mxu0
    %v369 = vadd.f32 %v290, %v368
    %v370 = vpop.f32.mrf.mxu0
    %v371 = vadd.f32 %v294, %v370
    %372 = vdwg.mxu0
    %373 = vmatprep.subr.mxu0 0.0
    %374 = vmatpush1.msra.mxu0 %v284
    %375 = vmatprep.subr.mxu0 0.0
    %376 = vmatpush1.msra.mxu0 %v281
    %377 = vmatprep.subr.mxu0 0.0
    %378 = vmatpush1.msra.mxu0 %v278
    %379 = vmatprep.subr.mxu0 0.0
    %380 = vmatpush1.msra.mxu0 %v275
    %381 = vmatprep.subr.mxu0 0.0
    %382 = vmatpush1.msra.mxu0 %v272
    %383 = vmatprep.subr.mxu0 0.0
    %384 = vmatpush1.msra.mxu0 %v269
    %385 = vmatprep.subr.mxu0 0.0
    %386 = vmatpush1.msra.mxu0 %v266
    %387 = vmatprep.subr.mxu0 0.0
    %388 = vmatpush1.msra.mxu0 %v263
    %389 = vmatprep.subr.mxu0 0.0
    %390 = vmatpush1.msra.mxu0 %v260
    %391 = vmatprep.subr.mxu0 0.0
    %392 = vmatpush1.msra.mxu0 %v257
    %393 = vmatprep.subr.mxu0 0.0
    %394 = vmatpush1.msra.mxu0 %v254
    %395 = vmatprep.subr.mxu0 0.0
    %396 = vmatpush1.msra.mxu0 %v251
    %397 = vmatprep.subr.mxu0 0.0
    %398 = vmatpush1.msra.mxu0 %v248
    %399 = vmatprep.subr.mxu0 0.0
    %400 = vmatpush1.msra.mxu0 %v245
    %401 = vmatprep.subr.mxu0 0.0
    %402 = vmatpush1.msra.mxu0 %v242
    %403 = vmatprep.subr.mxu0 0.0
    %404 = vmatpush1.msra.mxu0 %v239
    %405 = vmatprep.subr.mxu0 0.0
    %406 = vmatpush2.msra.mxu0 0.0
    %407 = vmatprep.subr.mxu0 0.0
    %408 = vmatpush2.msra.mxu0 0.0
    %409 = vmatprep.subr.mxu0 0.0
    %410 = vmatpush2.msra.mxu0 0.0
    %411 = vmatprep.subr.mxu0 0.0
    %412 = vmatpush2.msra.mxu0 0.0
    %413 = vmatprep.subr.mxu0 0.0
    %414 = vmatpush2.msra.mxu0 0.0
    %415 = vmatprep.subr.mxu0 0.0
    %416 = vmatpush2.msra.mxu0 0.0
    %417 = vmatprep.subr.mxu0 0.0
    %418 = vmatpush2.msra.mxu0 0.0
    %419 = vmatprep.subr.mxu0 0.0
    %420 = vmatpush2.msra.mxu0 0.0
    %421 = vmatprep.subr.mxu0 0.0
    %422 = vmatpush2.msra.mxu0 0.0
    %423 = vmatprep.subr.mxu0 0.0
    %424 = vmatpush2.msra.mxu0 0.0
    %425 = vmatprep.subr.mxu0 0.0
    %426 = vmatpush2.msra.mxu0 0.0
    %427 = vmatprep.subr.mxu0 0.0
    %428 = vmatpush2.msra.mxu0 0.0
    %429 = vmatprep.subr.mxu0 0.0
    %430 = vmatpush2.msra.mxu0 0.0
    %431 = vmatprep.subr.mxu0 0.0
    %432 = vmatpush2.msra.mxu0 0.0
    %433 = vmatprep.subr.mxu0 0.0
    %434 = vmatpush2.msra.mxu0 0.0
    %435 = vmatprep.subr.mxu0 0.0
    %436 = vmatpush2.msra.mxu0 0.0
    %437 = vmatprep.mubr.f32.mxu0 0.0
    %438 = vmatmul.mubr.f32.gmra.mxu0 %v236
    %v439 = vpop.f32.mrf.mxu0
    %v440 = vadd.f32 %v298, %v439
    %v441 = vpop.f32.mrf.mxu0
    %442 = vdwg.mxu0
    %v443 = vadd.f32 %v371, %v440
    %v444 = vmul.f32 %v443, 0.5
    %v445 = vsub.f32 %v369, %v444
    %v446 = vadd.f32 %v371, %v445
    %447 = vmax.xlane.f32.xlu0 %v446
    %v448 = vpop.xlane.xlu0 %447
    %v449 = vsub.f32 %v446, %v448
    %v450 = vmul.f32 %v449, 1.442695
    %v451 = vpow.pop %v450
    %452 = vadd.xlane.f32.xlu0 %v451
    %v453 = vpop.xlane.xlu0 %452
    %v454 = vrcp.pop %v453
    %v455 = vmul.f32 %v453, %v454
    %v456 = vsub.f32 2.0, %v455
    %v457 = vmul.f32 %v454, %v456
    %v458 = vmul.f32 %v451, %v457
    %v459 = vadd.f32 %v440, %v445
    %460 = vmax.xlane.f32.xlu0 %v459
    %v461 = vpop.xlane.xlu0 %460
    %v462 = vsub.f32 %v459, %v461
    %v463 = vmul.f32 %v462, 1.442695
    %v464 = vpow.pop %v463
    %465 = vadd.xlane.f32.xlu0 %v464
    %v466 = vpop.xlane.xlu0 %465
    %v467 = vrcp.pop %v466
    %v468 = vmul.f32 %v466, %v467
    %v469 = vsub.f32 2.0, %v468
    %v470 = vmul.f32 %v467, %v469
    %v471 = vmul.f32 %v464, %v470
    %472 = vrot.lane.b32.xlu0 %v471, 64
    %v473 = vpop.permute.xlu0 %472
    %v474 = vadd.f32 %v458, %v473
    %475 = vst [vmem:[#allocation7] sm:$0xff] %v474
    // Predicated region
    $region38: #{tpu_custom_call.1} parent=1 // pred_check
      _
    $region39: #{tpu_custom_call.1} parent=1 // pred_check_branch
      %477 = sbr.rel (0) target = $region41
    $region40: #{tpu_custom_call.1} parent=1 // pred_region
      %s479 = ssub.s32 128, 128
      %480 = vsyncadd [#allocation4], %s479
      %s482 = sshll.u32 [#allocation7], 4
      %s483 = int_to_ptr.vmem [resolvable:$true] %s482
      %485 = dma.vmem_to_hbm [thread:$0]  %s483, 128, %s7, [#allocation4]
    $region41: #{tpu_custom_call.1} parent=1 // pred_fallthru
      _
    // Predicated region
    $region42: #{tpu_custom_call.1} parent=1 // pred_check
      _
    $region43: #{tpu_custom_call.1} parent=1 // pred_check_branch
      %487 = sbr.rel (0) target = $region45
    $region44: #{tpu_custom_call.1} parent=1 // pred_region
      %488 = dma.done [#allocation4], 128
    $region45: #{tpu_custom_call.1} parent=1 // pred_fallthru
      _
    %489 = vsyncpa [#allocation3], 1
    %490 = vsyncpa [#allocation6], 1
    %491 = vsyncpa [#allocation4], 1

</llo_original>
